<compile_context>
chip_gen: v6e
topology: v6e:2x2x1
jax: 0.10.0
libtpu: 0.0.40
codegen_flags: <defaults>
</compile_context>

<pallas_src>
import jax
import jax.numpy as jnp
from jax.experimental import pallas as pl
from jax.experimental.pallas import tpu as pltpu

_BN_EPS = 1e-3      # nn.BatchNorm1d(..., eps=0.001) used by scvi FCLayers
_NEG_PAD = -1e30    # scale-head bias for padded gene columns / softmax-max init


def _round_up(x: int, m: int) -> int:
    return -(-x // m) * m


# --------------------------------------------------------------------------
# pass 1: hidden activations + online-softmax statistics over gene tiles
# --------------------------------------------------------------------------
def _stats_kernel(z_ref, lib_ref, wd_ref, bd_ref, ws_ref, bs_ref,
                  h_ref, m_ref, linv_ref, explib_ref):
    """grid = (batch_tiles, gene_tiles); gene axis is an online-softmax reduction."""
    k = pl.program_id(1)

    @pl.when(k == 0)
    def _init():
        wd = wd_ref[...]
        h = jnp.dot(z_ref[...].astype(wd.dtype), wd,
                    preferred_element_type=jnp.float32) + bd_ref[...]
        h_ref[...] = jnp.maximum(h, 0.0)                       # FCLayers ReLU (BN folded)
        m_ref[...] = jnp.full(m_ref.shape, _NEG_PAD, m_ref.dtype)
        linv_ref[...] = jnp.zeros(linv_ref.shape, linv_ref.dtype)
        explib_ref[...] = jnp.exp(lib_ref[...])                # hoisted out of gene loop

    ws = ws_ref[...]
    s = jnp.dot(h_ref[...].astype(ws.dtype), ws,
                preferred_element_type=jnp.float32) + bs_ref[...]
    m_old = m_ref[...]
    m_new = jnp.maximum(m_old, jnp.max(s, axis=-1, keepdims=True))
    l_new = (linv_ref[...] * jnp.exp(m_old - m_new)
             + jnp.sum(jnp.exp(s - m_new), axis=-1, keepdims=True))
    m_ref[...] = m_new
    linv_ref[...] = l_new            # running sum until the finalize step below

    @pl.when(k == pl.num_programs(1) - 1)
    def _finalize():
        # exact (non-approx) reciprocal: only TB scalars per batch tile.
        linv_ref[...] = 1.0 / linv_ref[...]


# --------------------------------------------------------------------------
# pass 2: recompute logits per gene tile and emit all ZINB parameters
# --------------------------------------------------------------------------
def _make_emit_kernel(with_r: bool):
    def kernel(h_ref, m_ref, linv_ref, explib_ref,
               ws_ref, bs_ref, wdo_ref, bdo_ref, *rest):
        if with_r:
            wr_ref, br_ref, scale_ref, r_ref, rate_ref, drop_ref = rest
        else:
            scale_ref, rate_ref, drop_ref = rest

        ws = ws_ref[...]
        h = h_ref[...].astype(ws.dtype)
        s = jnp.dot(h, ws, preferred_element_type=jnp.float32) + bs_ref[...]
        scale = jnp.exp(s - m_ref[...]) * linv_ref[...]
        scale_ref[...] = scale.astype(scale_ref.dtype)
        rate_ref[...] = (explib_ref[...] * scale).astype(rate_ref.dtype)

        drop = jnp.dot(h, wdo_ref[...],
                       preferred_element_type=jnp.float32) + bdo_ref[...]
        drop_ref[...] = drop.astype(drop_ref.dtype)
        if with_r:
            r = jnp.dot(h, wr_ref[...],
                        preferred_element_type=jnp.float32) + br_ref[...]
            r_ref[...] = r.astype(r_ref.dtype)
    return kernel


# --------------------------------------------------------------------------
# wrapper
# --------------------------------------------------------------------------
def decoder_scvi_forward(dispersion, z, library, params, *, bn_params=None,
                         batch_tile=256, gene_tile=1024,
                         weight_dtype=jnp.bfloat16, out_dtype=jnp.float32):
    """Pallas equivalent of DecoderSCVI.forward(dispersion, z, library).

    Returns (px_scale, px_r, px_rate, px_dropout); px_r is None unless
    dispersion == 'gene-cell' (same contract as the PyTorch module).
    bn_params: optional (gamma, beta, running_mean, running_var) of the
    FCLayers BatchNorm1d; defaults to eval-mode init stats.
    Note: out_dtype=bfloat16 halves output-write HBM traffic but requires the
    batch tile to be a multiple of 16.
    """
    wd, bd, ws, bs, wr, br, wdo, bdo = params
    B, L = z.shape
    H = wd.shape[1]
    G = ws.shape[1]
    with_r = (dispersion == "gene-cell")
    library = jnp.asarray(library, jnp.float32).reshape(B, 1)

    bd = jnp.asarray(bd).reshape(1, H)
    bs = jnp.asarray(bs).reshape(1, G)
    bdo = jnp.asarray(bdo).reshape(1, G)
    br = jnp.asarray(br).reshape(1, G)

    # ---- fold eval-mode BatchNorm1d into the FCLayers linear (zero kernel cost)
    if bn_params is None:
        gamma = jnp.ones((1, H), jnp.float32)
        beta = jnp.zeros((1, H), jnp.float32)
        mean = jnp.zeros((1, H), jnp.float32)
        var = jnp.ones((1, H), jnp.float32)
    else:
        gamma, beta, mean, var = (jnp.asarray(p, jnp.float32).reshape(1, H)
                                  for p in bn_params)
    bn_scale = gamma / jnp.sqrt(var + _BN_EPS)
    wd_f = (wd * bn_scale).astype(weight_dtype)
    bd_f = ((bd - mean) * bn_scale + beta).astype(jnp.float32)

    # ---- tiling
    if B <= batch_tile:
        TB, Bp = B, B
    else:
        TB = batch_tile
        Bp = _round_up(B, TB)
    TG = min(gene_tile, _round_up(G, 128))
    Gp = _round_up(G, TG)
    nb, ng = Bp // TB, Gp // TG
    pad_b, pad_g = Bp - B, Gp - G

    z_in, lib_in = z, library
    if pad_b:
        z_in = jnp.pad(z, ((0, pad_b), (0, 0)))
        lib_in = jnp.pad(library, ((0, pad_b), (0, 0)))

    def pad_head(w, b, bias_pad):
        if pad_g:
            w = jnp.pad(w, ((0, 0), (0, pad_g)))
            b = jnp.pad(b, ((0, 0), (0, pad_g)), constant_values=bias_pad)
        return jnp.asarray(w).astype(weight_dtype), jnp.asarray(b).astype(jnp.float32)

    # padded scale-head columns get bias -1e30 so they never affect the softmax
    ws_p, bs_p = pad_head(ws, bs, _NEG_PAD)
    wdo_p, bdo_p = pad_head(wdo, bdo, 0.0)
    if with_r:
        wr_p, br_p = pad_head(wr, br, 0.0)

    # ---- generation-aware VMEM budget (~80% of physical), from pass-2 footprint
    try:
        vmem_cap = int(pltpu.get_tpu_info().vmem_capacity_bytes)
    except Exception:  # pragma: no cover - conservative fallback
        vmem_cap = 64 << 20
    wbytes = jnp.dtype(weight_dtype).itemsize
    obytes = jnp.dtype(out_dtype).itemsize
    n_heads = 3 if with_r else 2
    n_out = 4 if with_r else 3
    resident = 2 * (TB * H * 4 + 3 * TB * 4)                       # h, m, 1/l, exp(lib)
    stream_in = 2 * n_heads * (H * TG * wbytes + TG * 4)           # double-buffered W tiles
    stream_out = 2 * n_out * TB * TG * obytes                      # double-buffered out tiles
    act = (n_out + 2) * TB * TG * 4                                # per-step temporaries
    vmem_limit = int(min(max(resident + stream_in + stream_out + act + (8 << 20),
                             32 << 20), int(vmem_cap * 0.8)))
    cparams = pltpu.CompilerParams(
        dimension_semantics=("parallel", "arbitrary"),   # batch across cores, gene = reduction
        vmem_limit_bytes=vmem_limit)

    # ---- pass 1: hidden layer + softmax statistics (streams scale-head weights)
    h, m, linv, explib = pl.pallas_call(
        _stats_kernel,
        grid=(nb, ng),
        in_specs=[
            pl.BlockSpec((TB, L), lambda i, k: (i, 0)),    # z tile
            pl.BlockSpec((TB, 1), lambda i, k: (i, 0)),    # library tile
            pl.BlockSpec((L, H), lambda i, k: (0, 0)),     # folded decoder W (resident)
            pl.BlockSpec((1, H), lambda i, k: (0, 0)),     # folded decoder b (resident)
            pl.BlockSpec((H, TG), lambda i, k: (0, k)),    # scale-head W (streamed)
            pl.BlockSpec((1, TG), lambda i, k: (0, k)),    # scale-head b (streamed)
        ],
        out_specs=(
            pl.BlockSpec((TB, H), lambda i, k: (i, 0)),    # hidden activations
            pl.BlockSpec((TB, 1), lambda i, k: (i, 0)),    # row max
            pl.BlockSpec((TB, 1), lambda i, k: (i, 0)),    # 1 / row-sum-of-exp
            pl.BlockSpec((TB, 1), lambda i, k: (i, 0)),    # exp(library)
        ),
        out_shape=(
            jax.ShapeDtypeStruct((Bp, H), jnp.float32),
            jax.ShapeDtypeStruct((Bp, 1), jnp.float32),
            jax.ShapeDtypeStruct((Bp, 1), jnp.float32),
            jax.ShapeDtypeStruct((Bp, 1), jnp.float32),
        ),
        compiler_params=cparams,
    )(z_in, lib_in, wd_f, bd_f, ws_p, bs_p)

    # ---- pass 2: stream all head weights per gene tile and emit outputs
    stat_spec = pl.BlockSpec((TB, 1), lambda i, k: (i, 0))
    head_w_spec = pl.BlockSpec((H, TG), lambda i, k: (0, k))
    head_b_spec = pl.BlockSpec((1, TG), lambda i, k: (0, k))
    out_tile_spec = pl.BlockSpec((TB, TG), lambda i, k: (i, k))

    emit_in_specs = [
        pl.BlockSpec((TB, H), lambda i, k: (i, 0)),        # hidden (resident per batch tile)
        stat_spec, stat_spec, stat_spec,                   # m, 1/l, exp(lib)
        head_w_spec, head_b_spec,                          # px_scale head
        head_w_spec, head_b_spec,                          # px_dropout head
    ]
    emit_inputs = [h, m, linv, explib, ws_p, bs_p, wdo_p, bdo_p]
    if with_r:
        emit_in_specs += [head_w_spec, head_b_spec]        # px_r head
        emit_inputs += [wr_p, br_p]

    outs = pl.pallas_call(
        _make_emit_kernel(with_r),
        grid=(nb, ng),
        in_specs=emit_in_specs,
        out_specs=tuple(out_tile_spec for _ in range(n_out)),
        out_shape=tuple(jax.ShapeDtypeStruct((Bp, Gp), out_dtype)
                        for _ in range(n_out)),
        compiler_params=cparams,
    )(*emit_inputs)

    if pad_b or pad_g:
        outs = tuple(o[:B, :G] for o in outs)

    if with_r:
        px_scale, px_r, px_rate, px_dropout = outs
    else:
        px_scale, px_rate, px_dropout = outs
        px_r = None
    return px_scale, px_r, px_rate, px_dropout


def init_params(key, n_latent, n_hidden, n_output):
    """Deterministic PyTorch-style (uniform fan-in) init of all Linear layers."""
    def linear(k, fan_in, fan_out):
        kw, kb = jax.random.split(k)
        bound = 1.0 / float(fan_in) ** 0.5
        w = jax.random.uniform(kw, (fan_in, fan_out), jnp.float32, -bound, bound)
        b = jax.random.uniform(kb, (1, fan_out), jnp.float32, -bound, bound)
        return w, b

    ks = jax.random.split(key, 4)
    wd, bd = linear(ks[0], n_latent, n_hidden)    # px_decoder (FCLayers linear)
    ws, bs = linear(ks[1], n_hidden, n_output)    # px_scale_decoder (pre-softmax)
    wr, br = linear(ks[2], n_hidden, n_output)    # px_r_decoder
    wdo, bdo = linear(ks[3], n_hidden, n_output)  # px_dropout_decoder
    return (wd, bd, ws, bs, wr, br, wdo, bdo)


def _ref_forward(dispersion, z, library, params):
    """Pure-JAX reference (f32, eval-mode init-stats BatchNorm)."""
    wd, bd, ws, bs, wr, br, wdo, bdo = params
    hi = jax.lax.Precision.HIGHEST
    h = jnp.maximum((jnp.dot(z, wd, precision=hi) + bd)
                    / jnp.sqrt(jnp.float32(1.0 + _BN_EPS)), 0.0)
    logits = jnp.dot(h, ws, precision=hi) + bs
    scale = jax.nn.softmax(logits, axis=-1)
    rate = jnp.exp(library) * scale
    drop = jnp.dot(h, wdo, precision=hi) + bdo
    r = (jnp.dot(h, wr, precision=hi) + br) if dispersion == "gene-cell" else None
    return scale, r, rate, drop


if __name__ == "__main__":
    # Small demo shapes: batch=16 (two batch tiles of 8), n_latent=16,
    # n_hidden=128, n_output(genes)=256 split into two gene tiles of 128
    # (exercises the online-softmax reduction across gene tiles).
    B, L, H, G = 16, 16, 128, 256

    key = jax.random.PRNGKey(0)
    k_z, k_l, k_p = jax.random.split(key, 3)
    z = jax.random.normal(k_z, (B, L), jnp.float32)
    library = jnp.log(jnp.float32(1000.0)) + 0.1 * jax.random.normal(
        k_l, (B, 1), jnp.float32)
    params = init_params(k_p, L, H, G)

    # --- f32 validation run (dispersion='gene-cell' -> all four outputs) ----
    outs = decoder_scvi_forward("gene-cell", z, library, params,
                                batch_tile=8, gene_tile=128,
                                weight_dtype=jnp.float32)
    jax.block_until_ready(outs)
    px_scale, px_r, px_rate, px_dropout = outs
    assert px_scale.shape == (B, G) and px_rate.shape == (B, G)
    assert px_r.shape == (B, G) and px_dropout.shape == (B, G)

    r_scale, r_r, r_rate, r_drop = _ref_forward("gene-cell", z, library, params)

    def maxdiff(a, b):
        return float(jnp.max(jnp.abs(a - b)))

    assert maxdiff(px_scale, r_scale) < 5e-4
    assert maxdiff(px_rate, r_rate) < 5e-2
    assert maxdiff(px_dropout, r_drop) < 5e-3
    assert maxdiff(px_r, r_r) < 5e-3
    assert float(jnp.max(jnp.abs(jnp.sum(px_scale, axis=-1) - 1.0))) < 1e-3
    for o in (px_scale, px_r, px_rate, px_dropout):
        assert bool(jnp.all(jnp.isfinite(o)))

    # --- default bf16-weight run (dispersion='gene' -> px_r is None) --------
    s2, r2, rate2, d2 = decoder_scvi_forward("gene", z, library, params,
                                             batch_tile=8, gene_tile=128)
    jax.block_until_ready((s2, rate2, d2))
    assert r2 is None
    assert s2.shape == (B, G) and rate2.shape == (B, G) and d2.shape == (B, G)
    for o in (s2, rate2, d2):
        assert bool(jnp.all(jnp.isfinite(o)))
    # softmax self-normalization is exact up to f32 rounding even with bf16 weights
    assert float(jnp.max(jnp.abs(jnp.sum(s2, axis=-1) - 1.0))) < 1e-3

    print("KERNEL_OK")
</pallas_src>

<mosaic_0001>
module attributes {stable_mosaic.version = 11 : i64} {
  func.func @_stats_kernel(%arg0: i32, %arg1: i32, %arg2: memref<8x16xf32, #tpu.memory_space<vmem>>, %arg3: memref<8x1xf32, #tpu.memory_space<vmem>>, %arg4: memref<16x128xf32, #tpu.memory_space<vmem>>, %arg5: memref<1x128xf32, #tpu.memory_space<vmem>>, %arg6: memref<128x128xf32, #tpu.memory_space<vmem>>, %arg7: memref<1x128xf32, #tpu.memory_space<vmem>>, %arg8: memref<8x128xf32, #tpu.memory_space<vmem>>, %arg9: memref<8x1xf32, #tpu.memory_space<vmem>>, %arg10: memref<8x1xf32, #tpu.memory_space<vmem>>, %arg11: memref<8x1xf32, #tpu.memory_space<vmem>>) attributes {dimension_semantics = [#tpu.dimension_semantics<parallel>, #tpu.dimension_semantics<arbitrary>], iteration_bounds = array<i64: 2, 2>, scalar_prefetch = 0 : i64, scratch_operands = 0 : i64, tpu.core_type = #tpu.core_type<tc>, window_params = [{transform_indices = @transform_0, window_bounds = array<i64: 8, 16>}, {transform_indices = @transform_1, window_bounds = array<i64: 8, 1>}, {pipeline_mode = #tpu.pipeline_mode<synchronous>, transform_indices = @transform_2, window_bounds = array<i64: 16, 128>}, {pipeline_mode = #tpu.pipeline_mode<synchronous>, transform_indices = @transform_3, window_bounds = array<i64: 1, 128>}, {transform_indices = @transform_4, window_bounds = array<i64: 128, 128>}, {transform_indices = @transform_5, window_bounds = array<i64: 1, 128>}, {transform_indices = @transform_6, window_bounds = array<i64: 8, 128>}, {transform_indices = @transform_7, window_bounds = array<i64: 8, 1>}, {transform_indices = @transform_8, window_bounds = array<i64: 8, 1>}, {transform_indices = @transform_9, window_bounds = array<i64: 8, 1>}]} {
    %c0_i32 = arith.constant 0 : i32
    %0 = arith.cmpi eq, %arg1, %c0_i32 : i32
    %1 = arith.extui %0 : i1 to i32
    %c0_i32_0 = arith.constant 0 : i32
    %2 = arith.cmpi ne, %1, %c0_i32_0 : i32
    scf.if %2 {
      %c0_17 = arith.constant 0 : index
      %c0_18 = arith.constant 0 : index
      %28 = vector.load %arg4[%c0_17, %c0_18] : memref<16x128xf32, #tpu.memory_space<vmem>>, vector<16x128xf32>
      %c0_19 = arith.constant 0 : index
      %c0_20 = arith.constant 0 : index
      %29 = vector.load %arg2[%c0_19, %c0_20] : memref<8x16xf32, #tpu.memory_space<vmem>>, vector<8x16xf32>
      %cst_21 = arith.constant dense<0.000000e+00> : vector<8x128xf32>
      %30 = tpu.matmul %29, %28, %cst_21 {dimension_numbers = #tpu.dot_dimension_numbers<[1], [0], [0], [1], [0, 0, 1, 1], [], []>} : vector<8x16xf32>, vector<16x128xf32>, vector<8x128xf32> -> vector<8x128xf32>
      %c0_22 = arith.constant 0 : index
      %c0_23 = arith.constant 0 : index
      %31 = vector.load %arg5[%c0_22, %c0_23] : memref<1x128xf32, #tpu.memory_space<vmem>>, vector<1x128xf32>
      %32 = vector.broadcast %31 : vector<1x128xf32> to vector<8x128xf32>
      %33 = arith.addf %30, %32 : vector<8x128xf32>
      %cst_24 = arith.constant 0.000000e+00 : f32
      %34 = vector.broadcast %cst_24 : f32 to vector<8x128xf32>
      %35 = arith.maximumf %33, %34 : vector<8x128xf32>
      %c0_25 = arith.constant 0 : index
      %c0_26 = arith.constant 0 : index
      %36 = vector.load %arg8[%c0_25, %c0_26] : memref<8x128xf32, #tpu.memory_space<vmem>>, vector<8x128xf32>
      tpu.vector_store %arg8[%c0_25, %c0_26], %35 {strides = array<i32>} : memref<8x128xf32, #tpu.memory_space<vmem>>, vector<8x128xf32>,
      %cst_27 = arith.constant -1.000000e+30 : f32
      %37 = vector.broadcast %cst_27 : f32 to vector<8x1xf32>
      %c0_28 = arith.constant 0 : index
      %c0_29 = arith.constant 0 : index
      %38 = vector.load %arg9[%c0_28, %c0_29] : memref<8x1xf32, #tpu.memory_space<vmem>>, vector<8x1xf32>
      tpu.vector_store %arg9[%c0_28, %c0_29], %37 {strides = array<i32>} : memref<8x1xf32, #tpu.memory_space<vmem>>, vector<8x1xf32>,
      %cst_30 = arith.constant 0.000000e+00 : f32
      %39 = vector.broadcast %cst_30 : f32 to vector<8x1xf32>
      %c0_31 = arith.constant 0 : index
      %c0_32 = arith.constant 0 : index
      %40 = vector.load %arg10[%c0_31, %c0_32] : memref<8x1xf32, #tpu.memory_space<vmem>>, vector<8x1xf32>
      tpu.vector_store %arg10[%c0_31, %c0_32], %39 {strides = array<i32>} : memref<8x1xf32, #tpu.memory_space<vmem>>, vector<8x1xf32>,
      %c0_33 = arith.constant 0 : index
      %c0_34 = arith.constant 0 : index
      %41 = vector.load %arg3[%c0_33, %c0_34] : memref<8x1xf32, #tpu.memory_space<vmem>>, vector<8x1xf32>
      %42 = math.exp %41 : vector<8x1xf32>
      %c0_35 = arith.constant 0 : index
      %c0_36 = arith.constant 0 : index
      %43 = vector.load %arg11[%c0_35, %c0_36] : memref<8x1xf32, #tpu.memory_space<vmem>>, vector<8x1xf32>
      tpu.vector_store %arg11[%c0_35, %c0_36], %42 {strides = array<i32>} : memref<8x1xf32, #tpu.memory_space<vmem>>, vector<8x1xf32>,
    } else {
    }
    %c0 = arith.constant 0 : index
    %c0_1 = arith.constant 0 : index
    %3 = vector.load %arg6[%c0, %c0_1] : memref<128x128xf32, #tpu.memory_space<vmem>>, vector<128x128xf32>
    %c0_2 = arith.constant 0 : index
    %c0_3 = arith.constant 0 : index
    %4 = vector.load %arg8[%c0_2, %c0_3] : memref<8x128xf32, #tpu.memory_space<vmem>>, vector<8x128xf32>
    %cst = arith.constant dense<0.000000e+00> : vector<8x128xf32>
    %5 = tpu.matmul %4, %3, %cst {dimension_numbers = #tpu.dot_dimension_numbers<[1], [0], [0], [1], [0, 0, 1, 1], [], []>} : vector<8x128xf32>, vector<128x128xf32>, vector<8x128xf32> -> vector<8x128xf32>
    %c0_4 = arith.constant 0 : index
    %c0_5 = arith.constant 0 : index
    %6 = vector.load %arg7[%c0_4, %c0_5] : memref<1x128xf32, #tpu.memory_space<vmem>>, vector<1x128xf32>
    %7 = vector.broadcast %6 : vector<1x128xf32> to vector<8x128xf32>
    %8 = arith.addf %5, %7 : vector<8x128xf32>
    %c0_6 = arith.constant 0 : index
    %c0_7 = arith.constant 0 : index
    %9 = vector.load %arg9[%c0_6, %c0_7] : memref<8x1xf32, #tpu.memory_space<vmem>>, vector<8x1xf32>
    %cst_8 = arith.constant dense<0xFF800000> : vector<8xf32>
    %10 = vector.multi_reduction <maximumf>, %8, %cst_8 [1] : vector<8x128xf32> to vector<8xf32>
    %11 = vector.shape_cast %10 : vector<8xf32> to vector<8x1xf32>
    %12 = arith.maximumf %9, %11 : vector<8x1xf32>
    %c0_9 = arith.constant 0 : index
    %c0_10 = arith.constant 0 : index
    %13 = vector.load %arg10[%c0_9, %c0_10] : memref<8x1xf32, #tpu.memory_space<vmem>>, vector<8x1xf32>
    %14 = arith.subf %9, %12 : vector<8x1xf32>
    %15 = math.exp %14 : vector<8x1xf32>
    %16 = arith.mulf %13, %15 : vector<8x1xf32>
    %17 = vector.broadcast %12 : vector<8x1xf32> to vector<8x128xf32>
    %18 = arith.subf %8, %17 : vector<8x128xf32>
    %19 = math.exp %18 : vector<8x128xf32>
    %cst_11 = arith.constant dense<0.000000e+00> : vector<8xf32>
    %20 = vector.multi_reduction <add>, %19, %cst_11 [1] : vector<8x128xf32> to vector<8xf32>
    %21 = vector.shape_cast %20 : vector<8xf32> to vector<8x1xf32>
    %22 = arith.addf %16, %21 : vector<8x1xf32>
    %c0_12 = arith.constant 0 : index
    %c0_13 = arith.constant 0 : index
    %23 = vector.load %arg9[%c0_12, %c0_13] : memref<8x1xf32, #tpu.memory_space<vmem>>, vector<8x1xf32>
    tpu.vector_store %arg9[%c0_12, %c0_13], %12 {strides = array<i32>} : memref<8x1xf32, #tpu.memory_space<vmem>>, vector<8x1xf32>,
    %c0_14 = arith.constant 0 : index
    %c0_15 = arith.constant 0 : index
    %24 = vector.load %arg10[%c0_14, %c0_15] : memref<8x1xf32, #tpu.memory_space<vmem>>, vector<8x1xf32>
    tpu.vector_store %arg10[%c0_14, %c0_15], %22 {strides = array<i32>} : memref<8x1xf32, #tpu.memory_space<vmem>>, vector<8x1xf32>,
    %c1_i32 = arith.constant 1 : i32
    %25 = arith.cmpi eq, %arg1, %c1_i32 : i32
    %26 = arith.extui %25 : i1 to i32
    %c0_i32_16 = arith.constant 0 : i32
    %27 = arith.cmpi ne, %26, %c0_i32_16 : i32
    scf.if %27 {
      %c0_17 = arith.constant 0 : index
      %c0_18 = arith.constant 0 : index
      %28 = vector.load %arg10[%c0_17, %c0_18] : memref<8x1xf32, #tpu.memory_space<vmem>>, vector<8x1xf32>
      %cst_19 = arith.constant 1.000000e+00 : f32
      %29 = vector.broadcast %cst_19 : f32 to vector<8x1xf32>
      %30 = arith.divf %29, %28 : vector<8x1xf32>
      %c0_20 = arith.constant 0 : index
      %c0_21 = arith.constant 0 : index
      %31 = vector.load %arg10[%c0_20, %c0_21] : memref<8x1xf32, #tpu.memory_space<vmem>>, vector<8x1xf32>
      tpu.vector_store %arg10[%c0_20, %c0_21], %30 {strides = array<i32>} : memref<8x1xf32, #tpu.memory_space<vmem>>, vector<8x1xf32>,
    } else {
    }
    return
  }
  func.func @transform_0(%arg0: i32, %arg1: i32) -> (i32, i32) {
    %c0_i32 = arith.constant 0 : i32
    %c0_i32_0 = arith.constant 0 : i32
    return %arg0, %c0_i32 : i32, i32
  }
  func.func @transform_1(%arg0: i32, %arg1: i32) -> (i32, i32) {
    %c0_i32 = arith.constant 0 : i32
    %c0_i32_0 = arith.constant 0 : i32
    return %arg0, %c0_i32 : i32, i32
  }
  func.func @transform_2(%arg0: i32, %arg1: i32) -> (i32, i32) {
    %c0_i32 = arith.constant 0 : i32
    %c0_i32_0 = arith.constant 0 : i32
    %c0_i32_1 = arith.constant 0 : i32
    return %c0_i32, %c0_i32_0 : i32, i32
  }
  func.func @transform_3(%arg0: i32, %arg1: i32) -> (i32, i32) {
    %c0_i32 = arith.constant 0 : i32
    %c0_i32_0 = arith.constant 0 : i32
    %c0_i32_1 = arith.constant 0 : i32
    return %c0_i32, %c0_i32_0 : i32, i32
  }
  func.func @transform_4(%arg0: i32, %arg1: i32) -> (i32, i32) {
    %c0_i32 = arith.constant 0 : i32
    %c0_i32_0 = arith.constant 0 : i32
    return %c0_i32, %arg1 : i32, i32
  }
  func.func @transform_5(%arg0: i32, %arg1: i32) -> (i32, i32) {
    %c0_i32 = arith.constant 0 : i32
    %c0_i32_0 = arith.constant 0 : i32
    return %c0_i32, %arg1 : i32, i32
  }
  func.func @transform_6(%arg0: i32, %arg1: i32) -> (i32, i32) {
    %c0_i32 = arith.constant 0 : i32
    %c0_i32_0 = arith.constant 0 : i32
    return %arg0, %c0_i32 : i32, i32
  }
  func.func @transform_7(%arg0: i32, %arg1: i32) -> (i32, i32) {
    %c0_i32 = arith.constant 0 : i32
    %c0_i32_0 = arith.constant 0 : i32
    return %arg0, %c0_i32 : i32, i32
  }
  func.func @transform_8(%arg0: i32, %arg1: i32) -> (i32, i32) {
    %c0_i32 = arith.constant 0 : i32
    %c0_i32_0 = arith.constant 0 : i32
    return %arg0, %c0_i32 : i32, i32
  }
  func.func @transform_9(%arg0: i32, %arg1: i32) -> (i32, i32) {
    %c0_i32 = arith.constant 0 : i32
    %c0_i32_0 = arith.constant 0 : i32
    return %arg0, %c0_i32 : i32, i32
  }
}

</mosaic_0001>

<llo_original>
// kernel: tpu_custom_call.1
$region0: #{tpu_custom_call.1}
  #allocation0 [shape = 'u32[]', space=smem, size = 0x4, offset = 0x4, fixed_abs, tag = 'smem constant byte address 0x4 - core index']
  #allocation1 [shape = 'u32[144,128]{1,0:T(1,128)}', space=vmem, size = 0x12000, scoped, tag = 'internal scratch']
  %s0 = inlined_call_operand.vmem [shape: f32[16,16], index: 0, kind: input, shape index: {}]
  %s1 = inlined_call_operand.vmem [shape: f32[16,1], index: 1, kind: input, shape index: {}]
  %s2 = inlined_call_operand.hbm [shape: f32[16,128], index: 2, kind: input, shape index: {}]
  %s3 = inlined_call_operand.vmem [shape: f32[1,128], index: 3, kind: input, shape index: {}]
  %s4 = inlined_call_operand.hbm [shape: f32[128,256], index: 4, kind: input, shape index: {}]
  %s5 = inlined_call_operand.vmem [shape: f32[1,256], index: 5, kind: input, shape index: {}]
  %s6 = inlined_call_operand.hbm [shape: f32[16,128], index: 6, kind: output, shape index: {0}]
  %s7 = inlined_call_operand.vmem [shape: f32[16,1], index: 7, kind: output, shape index: {1}]
  %s8 = inlined_call_operand.vmem [shape: f32[16,1], index: 8, kind: output, shape index: {2}]
  %s9 = inlined_call_operand.vmem [shape: f32[16,1], index: 9, kind: output, shape index: {3}]
  %10 = xla_tuple %s6, %s7, %s8, %s9
  %s11 = sld [smem:[#allocation0]]
  $region97: #{tpu_custom_call.1} parent=0
    _
  %s13 = ssub.s32 1, %s11
  %s14 = scalar_select 0, %s13, %s11
  $region1: #{tpu_custom_call.1} parent=0
    #allocation2 [shape = 'u8[8192]{0}', space=vmem, size = 0x2000, scoped, tag = 'input window, operand 2, single buffered']
    #allocation3 [shape = 's32[2]{0}', space=sflag, size = 0x8, scoped, tag = 'scoped memory for tpu_custom_call.1']
    #allocation4 [shape = 's32[2]{0}', space=sflag, size = 0x8, scoped, tag = 'scoped memory for tpu_custom_call.1']
    #allocation5 [shape = 'u8[131072]{0}', space=vmem, size = 0x20000, scoped, tag = 'input window, operand 4']
    #allocation6 [shape = 's32[2]{0}', space=sflag, size = 0x8, scoped, tag = 'scoped memory for tpu_custom_call.1']
    #allocation7 [shape = 'u8[8192]{0}', space=vmem, size = 0x2000, scoped, tag = 'output window, operand 0']
    %15 = vsyncpa [#allocation3], 0
    %16 = vsyncpa [#allocation6], 0
    %s17 = scalar_lea.sflag [#allocation6], 1
    %18 = vsyncpa %s17, 0
    %19 = vsyncpa [#allocation4], 0
    %s20 = scalar_lea.sflag [#allocation4], 1
    %21 = vsyncpa %s20, 0
    loop: start=0, step=1, limit=6
    $region2: #{tpu_custom_call.1} parent=1 // loop_pre_header
      _
    $region3: #{tpu_custom_call.1} parent=1 // loop_header
      %s23 = sphi 0, %s27
      %p24 = scmp.ge.s32.totalorder %s23, 6
      %s30 = sphi 0, %s42
      %s31 = sphi 0, %s38
      %s32 = sphi 0, %s30
      %s33 = sphi 0, %s31
      %s34 = sphi 0, %s32
      %s35 = sphi 0, %s33
      %s45 = sphi 0, %s47
      %s48 = sphi 0, %s45
      %s49 = sphi 0, %s48
      %s65 = sphi 0, %s49
      %s71 = sphi 0, %s73
      %s74 = sphi 0, %s71
      %s75 = sphi 0, %s74
      %s91 = sphi 0, %s75
      %s95 = sphi 0, %s95
      %s97 = sphi 0, %s95
      %s98 = sphi 0, %s97
      %s112 = sphi 0, %s98
      %s116 = sphi 0, %s116
      %s118 = sphi 0, %s116
      %s119 = sphi 0, %s118
      %s133 = sphi 0, %s119
      %s139 = sphi 0, %s141
      %s142 = sphi 0, %s139
      %s143 = sphi 0, %s142
      %s159 = sphi 0, %s143
      %s165 = sphi 0, %s167
      %s168 = sphi 0, %s165
      %s169 = sphi 0, %s168
      %s185 = sphi 0, %s169
      %s191 = sphi 0, %s193
      %s194 = sphi 0, %s191
      %s195 = sphi 0, %s194
      %s211 = sphi 0, %s195
      %s217 = sphi 0, %s219
      %s220 = sphi 0, %s217
      %s221 = sphi 0, %s220
      %s237 = sphi 0, %s221
      %s243 = sphi 0, %s245
      %s246 = sphi 0, %s243
      %s247 = sphi 0, %s246
      %s263 = sphi 0, %s247
      %s269 = sphi 0, %s271
      %s272 = sphi 0, %s269
      %s273 = sphi 0, %s272
      %s289 = sphi 0, %s273
    $region4: #{tpu_custom_call.1} parent=1 // loop_header_branch
      %26 = sbr.rel (%p24) target = $region8
    $region5: #{tpu_custom_call.1} parent=1 // loop_body
      %s28 = ssub.s32 %s23, 1
      %s29 = ssub.s32 %s23, 2
      %s36 = sadd.s32 1, %s31
      %p37 = scmp.ge.s32.totalorder %s36, 2
      %s38 = scalar_select %p37, 0, %s36
      %s39 = sadd.s32 1, %s30
      %s40 = scalar_select %p37, %s39, %s30
      %p41 = scmp.ge.s32.totalorder %s40, 2
      %s42 = scalar_select %p41, 0, %s40
      %s43 = ssub.s32 %s30, %s42
      %p44 = scmp.eq.s32.totalorder %s43, 0
      %s46 = sadd.s32 %s45, 1
      %s47 = scalar_select %p44, %s45, %s46
      %p50 = pneg %p44
      %p51 = scmp.eq.s32.totalorder %s23, 3
      %p52 = por %p50, %p51
      %p53 = scmp.ne.s32.totalorder %s45, %s48
      %p54 = scmp.eq.s32.totalorder %s23, 0
      %p55 = por %p53, %p54
      %p56 = scmp.ne.s32.totalorder %s45, %s48
      %p57 = scmp.eq.s32.totalorder %s28, 3
      %p58 = por %p56, %p57
      %p59 = scmp.ne.s32.totalorder %s48, %s49
      %p60 = scmp.eq.s32.totalorder %s28, 0
      %p61 = por %p59, %p60
      %p62 = scmp.ne.s32.totalorder %s48, %s49
      %p63 = scmp.eq.s32.totalorder %s29, 3
      %p64 = por %p62, %p63
      %p66 = scmp.ne.s32.totalorder %s49, %s65
      %p67 = scmp.eq.s32.totalorder %s29, 0
      %p68 = por %p66, %p67
      %s69 = ssub.s32 %s30, %s42
      %p70 = scmp.eq.s32.totalorder %s69, 0
      %s72 = sadd.s32 %s71, 1
      %s73 = scalar_select %p70, %s71, %s72
      %p76 = pneg %p70
      %p77 = scmp.eq.s32.totalorder %s23, 3
      %p78 = por %p76, %p77
      %p79 = scmp.ne.s32.totalorder %s71, %s74
      %p80 = scmp.eq.s32.totalorder %s23, 0
      %p81 = por %p79, %p80
      %p82 = scmp.ne.s32.totalorder %s71, %s74
      %p83 = scmp.eq.s32.totalorder %s28, 3
      %p84 = por %p82, %p83
      %p85 = scmp.ne.s32.totalorder %s74, %s75
      %p86 = scmp.eq.s32.totalorder %s28, 0
      %p87 = por %p85, %p86
      %p88 = scmp.ne.s32.totalorder %s74, %s75
      %p89 = scmp.eq.s32.totalorder %s29, 3
      %p90 = por %p88, %p89
      %p92 = scmp.ne.s32.totalorder %s75, %s91
      %p93 = scmp.eq.s32.totalorder %s29, 0
      %p94 = por %p92, %p93
      %s96 = sadd.s32 %s95, 1
      %p99 = scmp.eq.s32.totalorder %s23, 3
      %p100 = scmp.ne.s32.totalorder %s95, %s97
      %p101 = scmp.eq.s32.totalorder %s23, 0
      %p102 = por %p100, %p101
      %p103 = scmp.ne.s32.totalorder %s95, %s97
      %p104 = scmp.eq.s32.totalorder %s28, 3
      %p105 = por %p103, %p104
      %p106 = scmp.ne.s32.totalorder %s97, %s98
      %p107 = scmp.eq.s32.totalorder %s28, 0
      %p108 = por %p106, %p107
      %p109 = scmp.ne.s32.totalorder %s97, %s98
      %p110 = scmp.eq.s32.totalorder %s29, 3
      %p111 = por %p109, %p110
      %p113 = scmp.ne.s32.totalorder %s98, %s112
      %p114 = scmp.eq.s32.totalorder %s29, 0
      %p115 = por %p113, %p114
      %s117 = sadd.s32 %s116, 1
      %p120 = scmp.eq.s32.totalorder %s23, 3
      %p121 = scmp.ne.s32.totalorder %s116, %s118
      %p122 = scmp.eq.s32.totalorder %s23, 0
      %p123 = por %p121, %p122
      %p124 = scmp.ne.s32.totalorder %s116, %s118
      %p125 = scmp.eq.s32.totalorder %s28, 3
      %p126 = por %p124, %p125
      %p127 = scmp.ne.s32.totalorder %s118, %s119
      %p128 = scmp.eq.s32.totalorder %s28, 0
      %p129 = por %p127, %p128
      %p130 = scmp.ne.s32.totalorder %s118, %s119
      %p131 = scmp.eq.s32.totalorder %s29, 3
      %p132 = por %p130, %p131
      %p134 = scmp.ne.s32.totalorder %s119, %s133
      %p135 = scmp.eq.s32.totalorder %s29, 0
      %p136 = por %p134, %p135
      %s137 = ssub.s32 %s31, %s38
      %p138 = scmp.eq.s32.totalorder %s137, 0
      %s140 = sadd.s32 %s139, 1
      %s141 = scalar_select %p138, %s139, %s140
      %p144 = pneg %p138
      %p145 = scmp.eq.s32.totalorder %s23, 3
      %p146 = por %p144, %p145
      %p147 = scmp.ne.s32.totalorder %s139, %s142
      %p148 = scmp.eq.s32.totalorder %s23, 0
      %p149 = por %p147, %p148
      %p150 = scmp.ne.s32.totalorder %s139, %s142
      %p151 = scmp.eq.s32.totalorder %s28, 3
      %p152 = por %p150, %p151
      %p153 = scmp.ne.s32.totalorder %s142, %s143
      %p154 = scmp.eq.s32.totalorder %s28, 0
      %p155 = por %p153, %p154
      %p156 = scmp.ne.s32.totalorder %s142, %s143
      %p157 = scmp.eq.s32.totalorder %s29, 3
      %p158 = por %p156, %p157
      %p160 = scmp.ne.s32.totalorder %s143, %s159
      %p161 = scmp.eq.s32.totalorder %s29, 0
      %p162 = por %p160, %p161
      %s163 = ssub.s32 %s31, %s38
      %p164 = scmp.eq.s32.totalorder %s163, 0
      %s166 = sadd.s32 %s165, 1
      %s167 = scalar_select %p164, %s165, %s166
      %p170 = pneg %p164
      %p171 = scmp.eq.s32.totalorder %s23, 3
      %p172 = por %p170, %p171
      %p173 = scmp.ne.s32.totalorder %s165, %s168
      %p174 = scmp.eq.s32.totalorder %s23, 0
      %p175 = por %p173, %p174
      %p176 = scmp.ne.s32.totalorder %s165, %s168
      %p177 = scmp.eq.s32.totalorder %s28, 3
      %p178 = por %p176, %p177
      %p179 = scmp.ne.s32.totalorder %s168, %s169
      %p180 = scmp.eq.s32.totalorder %s28, 0
      %p181 = por %p179, %p180
      %p182 = scmp.ne.s32.totalorder %s168, %s169
      %p183 = scmp.eq.s32.totalorder %s29, 3
      %p184 = por %p182, %p183
      %p186 = scmp.ne.s32.totalorder %s169, %s185
      %p187 = scmp.eq.s32.totalorder %s29, 0
      %p188 = por %p186, %p187
      %s189 = ssub.s32 %s30, %s42
      %p190 = scmp.eq.s32.totalorder %s189, 0
      %s192 = sadd.s32 %s191, 1
      %s193 = scalar_select %p190, %s191, %s192
      %p196 = pneg %p190
      %p197 = scmp.eq.s32.totalorder %s23, 3
      %p198 = por %p196, %p197
      %p199 = scmp.ne.s32.totalorder %s191, %s194
      %p200 = scmp.eq.s32.totalorder %s23, 0
      %p201 = por %p199, %p200
      %p202 = scmp.ne.s32.totalorder %s191, %s194
      %p203 = scmp.eq.s32.totalorder %s28, 3
      %p204 = por %p202, %p203
      %p205 = scmp.ne.s32.totalorder %s194, %s195
      %p206 = scmp.eq.s32.totalorder %s28, 0
      %p207 = por %p205, %p206
      %p208 = scmp.ne.s32.totalorder %s194, %s195
      %p209 = scmp.eq.s32.totalorder %s29, 3
      %p210 = por %p208, %p209
      %p212 = scmp.ne.s32.totalorder %s195, %s211
      %p213 = scmp.eq.s32.totalorder %s29, 0
      %p214 = por %p212, %p213
      %s215 = ssub.s32 %s30, %s42
      %p216 = scmp.eq.s32.totalorder %s215, 0
      %s218 = sadd.s32 %s217, 1
      %s219 = scalar_select %p216, %s217, %s218
      %p222 = pneg %p216
      %p223 = scmp.eq.s32.totalorder %s23, 3
      %p224 = por %p222, %p223
      %p225 = scmp.ne.s32.totalorder %s217, %s220
      %p226 = scmp.eq.s32.totalorder %s23, 0
      %p227 = por %p225, %p226
      %p228 = scmp.ne.s32.totalorder %s217, %s220
      %p229 = scmp.eq.s32.totalorder %s28, 3
      %p230 = por %p228, %p229
      %p231 = scmp.ne.s32.totalorder %s220, %s221
      %p232 = scmp.eq.s32.totalorder %s28, 0
      %p233 = por %p231, %p232
      %p234 = scmp.ne.s32.totalorder %s220, %s221
      %p235 = scmp.eq.s32.totalorder %s29, 3
      %p236 = por %p234, %p235
      %p238 = scmp.ne.s32.totalorder %s221, %s237
      %p239 = scmp.eq.s32.totalorder %s29, 0
      %p240 = por %p238, %p239
      %s241 = ssub.s32 %s30, %s42
      %p242 = scmp.eq.s32.totalorder %s241, 0
      %s244 = sadd.s32 %s243, 1
      %s245 = scalar_select %p242, %s243, %s244
      %p248 = pneg %p242
      %p249 = scmp.eq.s32.totalorder %s23, 3
      %p250 = por %p248, %p249
      %p251 = scmp.ne.s32.totalorder %s243, %s246
      %p252 = scmp.eq.s32.totalorder %s23, 0
      %p253 = por %p251, %p252
      %p254 = scmp.ne.s32.totalorder %s243, %s246
      %p255 = scmp.eq.s32.totalorder %s28, 3
      %p256 = por %p254, %p255
      %p257 = scmp.ne.s32.totalorder %s246, %s247
      %p258 = scmp.eq.s32.totalorder %s28, 0
      %p259 = por %p257, %p258
      %p260 = scmp.ne.s32.totalorder %s246, %s247
      %p261 = scmp.eq.s32.totalorder %s29, 3
      %p262 = por %p260, %p261
      %p264 = scmp.ne.s32.totalorder %s247, %s263
      %p265 = scmp.eq.s32.totalorder %s29, 0
      %p266 = por %p264, %p265
      %s267 = ssub.s32 %s30, %s42
      %p268 = scmp.eq.s32.totalorder %s267, 0
      %s270 = sadd.s32 %s269, 1
      %s271 = scalar_select %p268, %s269, %s270
      %p274 = pneg %p268
      %p275 = scmp.eq.s32.totalorder %s23, 3
      %p276 = por %p274, %p275
      %p277 = scmp.ne.s32.totalorder %s269, %s272
      %p278 = scmp.eq.s32.totalorder %s23, 0
      %p279 = por %p277, %p278
      %p280 = scmp.ne.s32.totalorder %s269, %s272
      %p281 = scmp.eq.s32.totalorder %s28, 3
      %p282 = por %p280, %p281
      %p283 = scmp.ne.s32.totalorder %s272, %s273
      %p284 = scmp.eq.s32.totalorder %s28, 0
      %p285 = por %p283, %p284
      %p286 = scmp.ne.s32.totalorder %s272, %s273
      %p287 = scmp.eq.s32.totalorder %s29, 3
      %p288 = por %p286, %p287
      %p290 = scmp.ne.s32.totalorder %s273, %s289
      %p291 = scmp.eq.s32.totalorder %s29, 0
      %p292 = por %p290, %p291
      %p293 = scmp.le.s32.totalorder 1, %s23
      %p294 = scmp.lt.s32.totalorder %s23, 5
      %p295 = pnand %p293, %p294
      %p296 = pneg %p295
      // Predicated region
      $region9: #{tpu_custom_call.1} parent=5 // pred_check
        _
      $region10: #{tpu_custom_call.1} parent=5 // pred_check_branch
        %298 = sbr.rel (%p295) target = $region12
      $region11: #{tpu_custom_call.1} parent=5 // pred_region
        %s299 = ssub.s32 %s23, 1
        // Predicated region
        $region13: #{tpu_custom_call.1} parent=11 // pred_check
          %p300 = pneg %p108
        $region14: #{tpu_custom_call.1} parent=11 // pred_check_branch
          %302 = sbr.rel (%p300) target = $region16
        $region15: #{tpu_custom_call.1} parent=11 // pred_region
          %s304 = ssub.s32 256, 256
          %305 = vsyncadd [#allocation3], %s304
          %s306 = sshll.u32 [#allocation2], 4
          %s307 = int_to_ptr.vmem [resolvable:$true] %s306
          %312 = dma.hbm_to_vmem [thread:$0]  %s2, 256, %s307, [#allocation3], 128, 128, 8
        $region16: #{tpu_custom_call.1} parent=11 // pred_fallthru
          _
        // Predicated region
        $region17: #{tpu_custom_call.1} parent=11 // pred_check
          %p313 = pneg %p129
        $region18: #{tpu_custom_call.1} parent=11 // pred_check_branch
          %315 = sbr.rel (%p313) target = $region20
        $region19: #{tpu_custom_call.1} parent=11 // pred_region
          _
        $region20: #{tpu_custom_call.1} parent=11 // pred_fallthru
          _
      $region12: #{tpu_custom_call.1} parent=5 // pred_fallthru
        _
      %p316 = scmp.lt.s32.totalorder %s23, 4
      // Predicated region
      $region21: #{tpu_custom_call.1} parent=5 // pred_check
        %p317 = pneg %p316
      $region22: #{tpu_custom_call.1} parent=5 // pred_check_branch
        %319 = sbr.rel (%p317) target = $region24
      $region23: #{tpu_custom_call.1} parent=5 // pred_region
        // Predicated region
        $region25: #{tpu_custom_call.1} parent=23 // pred_check
          %p320 = pneg %p55
        $region26: #{tpu_custom_call.1} parent=23 // pred_check_branch
          %322 = sbr.rel (%p320) target = $region28
        $region27: #{tpu_custom_call.1} parent=23 // pred_region
          %p323 = scmp.lt.s32.totalorder %s30, 1
          %s324 = scalar_select %p323, %s30, 1
          %s325 = smul.addr %s324, 8
          %s326 = scalar_lea.vmem %s0, %s325
        $region28: #{tpu_custom_call.1} parent=23 // pred_fallthru
          _
        // Predicated region
        $region29: #{tpu_custom_call.1} parent=23 // pred_check
          %p327 = pneg %p81
        $region30: #{tpu_custom_call.1} parent=23 // pred_check_branch
          %329 = sbr.rel (%p327) target = $region32
        $region31: #{tpu_custom_call.1} parent=23 // pred_region
          %p330 = scmp.lt.s32.totalorder %s30, 1
          %s331 = scalar_select %p330, %s30, 1
          %s332 = smul.addr %s331, 8
          %s333 = scalar_lea.vmem %s1, %s332
        $region32: #{tpu_custom_call.1} parent=23 // pred_fallthru
          _
        // Predicated region
        $region33: #{tpu_custom_call.1} parent=23 // pred_check
          %p334 = pneg %p149
        $region34: #{tpu_custom_call.1} parent=23 // pred_check_branch
          %336 = sbr.rel (%p334) target = $region36
        $region35: #{tpu_custom_call.1} parent=23 // pred_region
          %s337 = sand.u32 %s139, 1
          %s338 = scalar_lea.sflag [#allocation6], %s337
          %s339 = sand.u32 %s139, 1
          %s340 = smul.addr %s339, 128
          %s341 = scalar_lea.vmem [#allocation5], %s340
          %s343 = ssub.s32 2048, 2048
          %344 = vsyncadd %s338, %s343
          %s345 = smul.addr %s31, 128
          %s346 = scalar_lea.hbm %s4, %s345
          %s347 = sshll.u32 %s341, 4
          %s348 = int_to_ptr.vmem [resolvable:$true] %s347
          %353 = dma.hbm_to_vmem [thread:$0]  %s346, 2048, %s348, %s338, 256, 128, 8
        $region36: #{tpu_custom_call.1} parent=23 // pred_fallthru
          _
        // Predicated region
        $region37: #{tpu_custom_call.1} parent=23 // pred_check
          %p354 = pneg %p175
        $region38: #{tpu_custom_call.1} parent=23 // pred_check_branch
          %356 = sbr.rel (%p354) target = $region40
        $region39: #{tpu_custom_call.1} parent=23 // pred_region
          %p357 = scmp.lt.s32.totalorder %s31, 1
          %s358 = scalar_select %p357, %s31, 1
          %s359 = scalar_lea.vmem %s5, %s358
        $region40: #{tpu_custom_call.1} parent=23 // pred_fallthru
          _
      $region24: #{tpu_custom_call.1} parent=5 // pred_fallthru
        _
      %p360 = scmp.le.s32.totalorder 1, %s23
      %p361 = scmp.lt.s32.totalorder %s23, 5
      %p362 = pnand %p360, %p361
      %p363 = pneg %p362
      // Predicated region
      $region41: #{tpu_custom_call.1} parent=5 // pred_check
        _
      $region42: #{tpu_custom_call.1} parent=5 // pred_check_branch
        %365 = sbr.rel (%p362) target = $region44
      $region43: #{tpu_custom_call.1} parent=5 // pred_region
        %s366 = ssub.s32 %s23, 1
        // Predicated region
        $region45: #{tpu_custom_call.1} parent=43 // pred_check
          %p367 = pneg %p108
        $region46: #{tpu_custom_call.1} parent=43 // pred_check_branch
          %369 = sbr.rel (%p367) target = $region48
        $region47: #{tpu_custom_call.1} parent=43 // pred_region
          %370 = dma.done [#allocation3], 256
        $region48: #{tpu_custom_call.1} parent=43 // pred_fallthru
          _
        %s371 = sand.u32 %s142, 1
        %s372 = scalar_lea.sflag [#allocation6], %s371
        %s373 = sand.u32 %s142, 1
        %s374 = smul.addr %s373, 128
        %s375 = scalar_lea.vmem [#allocation5], %s374
        // Predicated region
        $region49: #{tpu_custom_call.1} parent=43 // pred_check
          %p376 = pneg %p155
        $region50: #{tpu_custom_call.1} parent=43 // pred_check_branch
          %378 = sbr.rel (%p376) target = $region52
        $region51: #{tpu_custom_call.1} parent=43 // pred_region
          %379 = dma.done %s372, 2048
        $region52: #{tpu_custom_call.1} parent=43 // pred_fallthru
          _
        %p380 = scmp.lt.s32.totalorder %s32, 1
        %s381 = scalar_select %p380, %s32, 1
        %s382 = smul.addr %s381, 8
        %s383 = scalar_lea.vmem %s0, %s382
        %p384 = pneg %p61
        %p385 = pneg %p58
        %p386 = scmp.lt.s32.totalorder %s32, 1
        %s387 = scalar_select %p386, %s32, 1
        %s388 = smul.addr %s387, 8
        %s389 = scalar_lea.vmem %s1, %s388
        %p390 = pneg %p87
        %p391 = pneg %p84
        %p392 = pneg %p108
        %p393 = pneg %p105
        %p394 = pneg %p129
        %p395 = pneg %p126
        %s396 = sand.u32 %s142, 1
        %s397 = scalar_lea.sflag [#allocation6], %s396
        %s398 = sand.u32 %s142, 1
        %s399 = smul.addr %s398, 128
        %s400 = scalar_lea.vmem [#allocation5], %s399
        %p401 = pneg %p155
        %p402 = pneg %p152
        %p403 = scmp.lt.s32.totalorder %s33, 1
        %s404 = scalar_select %p403, %s33, 1
        %s405 = scalar_lea.vmem %s5, %s404
        %p406 = pneg %p181
        %p407 = pneg %p178
        %p408 = pneg %p207
        %p409 = pneg %p204
        %s410 = sand.u32 %s194, 1
        %s411 = scalar_lea.sflag [#allocation4], %s410
        %s412 = sand.u32 %s194, 1
        %s413 = smul.addr %s412, 8
        %s414 = scalar_lea.vmem [#allocation7], %s413
        %p415 = pneg %p233
        %p416 = pneg %p230
        %p417 = scmp.lt.s32.totalorder %s32, 1
        %s418 = scalar_select %p417, %s32, 1
        %s419 = smul.addr %s418, 8
        %s420 = scalar_lea.vmem %s7, %s419
        %p421 = pneg %p259
        %p422 = pneg %p256
        %p423 = scmp.lt.s32.totalorder %s32, 1
        %s424 = scalar_select %p423, %s32, 1
        %s425 = smul.addr %s424, 8
        %s426 = scalar_lea.vmem %s8, %s425
        %p427 = pneg %p285
        %p428 = pneg %p282
        %p429 = scmp.lt.s32.totalorder %s32, 1
        %s430 = scalar_select %p429, %s32, 1
        %s431 = smul.addr %s430, 8
        %s432 = scalar_lea.vmem %s9, %s431
        %p433 = scmp.lt.s32.totalorder %s32, 1
        %s434 = scalar_select %p433, %s32, 1
        %s435 = smul.addr %s434, 8
        %s436 = scalar_lea.vmem %s0, %s435
        %p437 = scmp.lt.s32.totalorder %s32, 1
        %s438 = scalar_select %p437, %s32, 1
        %s439 = smul.addr %s438, 8
        %s440 = scalar_lea.vmem %s1, %s439
        %p441 = scmp.lt.s32.totalorder %s33, 1
        %s442 = scalar_select %p441, %s33, 1
        %s443 = scalar_lea.vmem %s5, %s442
        %p444 = scmp.lt.s32.totalorder %s32, 1
        %s445 = scalar_select %p444, %s32, 1
        %s446 = smul.addr %s445, 8
        %s447 = scalar_lea.vmem %s7, %s446
        %p448 = scmp.lt.s32.totalorder %s32, 1
        %s449 = scalar_select %p448, %s32, 1
        %s450 = smul.addr %s449, 8
        %s451 = scalar_lea.vmem %s8, %s450
        %p452 = scmp.lt.s32.totalorder %s32, 1
        %s453 = scalar_select %p452, %s32, 1
        %s454 = smul.addr %s453, 8
        %s455 = scalar_lea.vmem %s9, %s454
        %p456 = scmp.eq.s32.totalorder %s33, 0
        // Predicated region
        $region53: #{tpu_custom_call.1} parent=43 // pred_check
          %p457 = pneg %p456
        $region54: #{tpu_custom_call.1} parent=43 // pred_check_branch
          %459 = sbr.rel (%p457) target = $region56
        $region55: #{tpu_custom_call.1} parent=43 // pred_region
          %v460 = vld [vmem:[#allocation2] sm:$0xff]
          %v461 = vld [vmem:[#allocation2 + $0x8] sm:$0xff]
          %v462 = vld [vmem:[%s436] sm:$0xff]
          %v463 = vld [vmem:[%s3] sm:$0x1]
          %v465 = vlaneseq
          %v466 = vshrl.u32 %v465, 7
          %v467 = vsub.s32 0, %v466
          %v468 = vrot.slane %v463, %v467
          %vm470 = vcmask 130048
          %v472 = vsel %vm470, %v462, 0
          %474 = vmatprep.subr.mxu0 0.0
          %475 = vmatpush1.msra.mxu0 0.0
          %476 = vmatprep.subr.mxu0 0.0
          %477 = vmatpush1.msra.mxu0 0.0
          %478 = vmatprep.subr.mxu0 0.0
          %479 = vmatpush1.msra.mxu0 0.0
          %480 = vmatprep.subr.mxu0 0.0
          %481 = vmatpush1.msra.mxu0 0.0
          %482 = vmatprep.subr.mxu0 0.0
          %483 = vmatpush1.msra.mxu0 0.0
          %484 = vmatprep.subr.mxu0 0.0
          %485 = vmatpush1.msra.mxu0 0.0
          %486 = vmatprep.subr.mxu0 0.0
          %487 = vmatpush1.msra.mxu0 0.0
          %488 = vmatprep.subr.mxu0 0.0
          %489 = vmatpush1.msra.mxu0 0.0
          %490 = vmatprep.subr.mxu0 0.0
          %491 = vmatpush1.msra.mxu0 0.0
          %492 = vmatprep.subr.mxu0 0.0
          %493 = vmatpush1.msra.mxu0 0.0
          %494 = vmatprep.subr.mxu0 0.0
          %495 = vmatpush1.msra.mxu0 0.0
          %496 = vmatprep.subr.mxu0 0.0
          %497 = vmatpush1.msra.mxu0 0.0
          %498 = vmatprep.subr.mxu0 0.0
          %499 = vmatpush1.msra.mxu0 0.0
          %500 = vmatprep.subr.mxu0 0.0
          %501 = vmatpush1.msra.mxu0 0.0
          %502 = vmatprep.subr.mxu0 0.0
          %503 = vmatpush1.msra.mxu0 %v461
          %504 = vmatprep.subr.mxu0 0.0
          %505 = vmatpush1.msra.mxu0 %v460
          %506 = vmatprep.subr.mxu0 0.0
          %507 = vmatpush2.msra.mxu0 0.0
          %508 = vmatprep.subr.mxu0 0.0
          %509 = vmatpush2.msra.mxu0 0.0
          %510 = vmatprep.subr.mxu0 0.0
          %511 = vmatpush2.msra.mxu0 0.0
          %512 = vmatprep.subr.mxu0 0.0
          %513 = vmatpush2.msra.mxu0 0.0
          %514 = vmatprep.subr.mxu0 0.0
          %515 = vmatpush2.msra.mxu0 0.0
          %516 = vmatprep.subr.mxu0 0.0
          %517 = vmatpush2.msra.mxu0 0.0
          %518 = vmatprep.subr.mxu0 0.0
          %519 = vmatpush2.msra.mxu0 0.0
          %520 = vmatprep.subr.mxu0 0.0
          %521 = vmatpush2.msra.mxu0 0.0
          %522 = vmatprep.subr.mxu0 0.0
          %523 = vmatpush2.msra.mxu0 0.0
          %524 = vmatprep.subr.mxu0 0.0
          %525 = vmatpush2.msra.mxu0 0.0
          %526 = vmatprep.subr.mxu0 0.0
          %527 = vmatpush2.msra.mxu0 0.0
          %528 = vmatprep.subr.mxu0 0.0
          %529 = vmatpush2.msra.mxu0 0.0
          %530 = vmatprep.subr.mxu0 0.0
          %531 = vmatpush2.msra.mxu0 0.0
          %532 = vmatprep.subr.mxu0 0.0
          %533 = vmatpush2.msra.mxu0 0.0
          %534 = vmatprep.subr.mxu0 0.0
          %535 = vmatpush2.msra.mxu0 0.0
          %536 = vmatprep.subr.mxu0 0.0
          %537 = vmatpush2.msra.mxu0 0.0
          %538 = vmatprep.mubr.f32.mxu0 0.0
          %539 = vmatmul.mubr.f32.gmra.mxu0 %v472
          %v540 = vpop.f32.mrf.mxu0
          %v541 = vadd.f32 %v468, %v540
          %v542 = vpop.f32.mrf.mxu0
          %543 = vdwg.mxu0
          %v544 = vmax.f32 %v541, 0.0
          %545 = vst [vmem:[%s414] sm:$0xff] %v544
          %vm546 = vcmask 7168
          %547 = vst.msk [vmem:[%s447] sm:$0xff] %vm546, -1e+30
          %548 = vst.msk [vmem:[%s451] sm:$0xff] %vm546, 0.0
          %v549 = vld [vmem:[%s440] sm:$0xff]
          %v550 = vmul.f32 %v549, 1.442695
          %v551 = vpow.pop %v550
          %552 = vst.msk [vmem:[%s455] sm:$0xff] %vm546, %v551
        $region56: #{tpu_custom_call.1} parent=43 // pred_fallthru
          _
        %v553 = vld [vmem:[%s375] sm:$0xff]
        %v554 = vld [vmem:[%s375 + $0x8] sm:$0xff]
        %v555 = vld [vmem:[%s375 + $0x10] sm:$0xff]
        %v556 = vld [vmem:[%s375 + $0x18] sm:$0xff]
        %v557 = vld [vmem:[%s375 + $0x20] sm:$0xff]
        %v558 = vld [vmem:[%s375 + $0x28] sm:$0xff]
        %v559 = vld [vmem:[%s375 + $0x30] sm:$0xff]
        %v560 = vld [vmem:[%s375 + $0x38] sm:$0xff]
        %v561 = vld [vmem:[%s375 + $0x40] sm:$0xff]
        %v562 = vld [vmem:[%s375 + $0x48] sm:$0xff]
        %v563 = vld [vmem:[%s375 + $0x50] sm:$0xff]
        %v564 = vld [vmem:[%s375 + $0x58] sm:$0xff]
        %v565 = vld [vmem:[%s375 + $0x60] sm:$0xff]
        %v566 = vld [vmem:[%s375 + $0x68] sm:$0xff]
        %v567 = vld [vmem:[%s375 + $0x70] sm:$0xff]
        %v568 = vld [vmem:[%s375 + $0x78] sm:$0xff]
        %v569 = vld [vmem:[%s414] sm:$0xff]
        %v570 = vld [vmem:[%s443] sm:$0x1]
        %v572 = vlaneseq
        %v573 = vshrl.u32 %v572, 7
        %v574 = vsub.s32 0, %v573
        %v575 = vrot.slane %v570, %v574
        %577 = vmatprep.subr.mxu0 0.0
        %578 = vmatpush1.msra.mxu0 %v568
        %579 = vmatprep.subr.mxu0 0.0
        %580 = vmatpush1.msra.mxu0 %v567
        %581 = vmatprep.subr.mxu0 0.0
        %582 = vmatpush1.msra.mxu0 %v566
        %583 = vmatprep.subr.mxu0 0.0
        %584 = vmatpush1.msra.mxu0 %v565
        %585 = vmatprep.subr.mxu0 0.0
        %586 = vmatpush1.msra.mxu0 %v564
        %587 = vmatprep.subr.mxu0 0.0
        %588 = vmatpush1.msra.mxu0 %v563
        %589 = vmatprep.subr.mxu0 0.0
        %590 = vmatpush1.msra.mxu0 %v562
        %591 = vmatprep.subr.mxu0 0.0
        %592 = vmatpush1.msra.mxu0 %v561
        %593 = vmatprep.subr.mxu0 0.0
        %594 = vmatpush1.msra.mxu0 %v560
        %595 = vmatprep.subr.mxu0 0.0
        %596 = vmatpush1.msra.mxu0 %v559
        %597 = vmatprep.subr.mxu0 0.0
        %598 = vmatpush1.msra.mxu0 %v558
        %599 = vmatprep.subr.mxu0 0.0
        %600 = vmatpush1.msra.mxu0 %v557
        %601 = vmatprep.subr.mxu0 0.0
        %602 = vmatpush1.msra.mxu0 %v556
        %603 = vmatprep.subr.mxu0 0.0
        %604 = vmatpush1.msra.mxu0 %v555
        %605 = vmatprep.subr.mxu0 0.0
        %606 = vmatpush1.msra.mxu0 %v554
        %607 = vmatprep.subr.mxu0 0.0
        %608 = vmatpush1.msra.mxu0 %v553
        %609 = vmatprep.subr.mxu0 0.0
        %610 = vmatpush2.msra.mxu0 0.0
        %611 = vmatprep.subr.mxu0 0.0
        %612 = vmatpush2.msra.mxu0 0.0
        %613 = vmatprep.subr.mxu0 0.0
        %614 = vmatpush2.msra.mxu0 0.0
        %615 = vmatprep.subr.mxu0 0.0
        %616 = vmatpush2.msra.mxu0 0.0
        %617 = vmatprep.subr.mxu0 0.0
        %618 = vmatpush2.msra.mxu0 0.0
        %619 = vmatprep.subr.mxu0 0.0
        %620 = vmatpush2.msra.mxu0 0.0
        %621 = vmatprep.subr.mxu0 0.0
        %622 = vmatpush2.msra.mxu0 0.0
        %623 = vmatprep.subr.mxu0 0.0
        %624 = vmatpush2.msra.mxu0 0.0
        %625 = vmatprep.subr.mxu0 0.0
        %626 = vmatpush2.msra.mxu0 0.0
        %627 = vmatprep.subr.mxu0 0.0
        %628 = vmatpush2.msra.mxu0 0.0
        %629 = vmatprep.subr.mxu0 0.0
        %630 = vmatpush2.msra.mxu0 0.0
        %631 = vmatprep.subr.mxu0 0.0
        %632 = vmatpush2.msra.mxu0 0.0
        %633 = vmatprep.subr.mxu0 0.0
        %634 = vmatpush2.msra.mxu0 0.0
        %635 = vmatprep.subr.mxu0 0.0
        %636 = vmatpush2.msra.mxu0 0.0
        %637 = vmatprep.subr.mxu0 0.0
        %638 = vmatpush2.msra.mxu0 0.0
        %639 = vmatprep.subr.mxu0 0.0
        %640 = vmatpush2.msra.mxu0 0.0
        %641 = vmatprep.mubr.f32.mxu0 0.0
        %642 = vmatmul.mubr.f32.gmra.mxu0 %v569
        %v643 = vpop.f32.mrf.mxu0
        %v644 = vadd.f32 %v575, %v643
        %v645 = vpop.f32.mrf.mxu0
        %646 = vdwg.mxu0
        %v647 = vld [vmem:[%s447] sm:$0xff]
        %648 = vmax.xlane.f32.xlu0 %v644
        %v649 = vpop.xlane.xlu0 %648
        %v650 = vmax.f32 %v647, %v649
        %v651 = vld [vmem:[%s451] sm:$0xff]
        %v652 = vsub.f32 %v647, %v650
        %v653 = vmul.f32 %v652, 1.442695
        %v654 = vpow.pop %v653
        %v655 = vmul.f32 %v651, %v654
        %657 = vset.pattern.permute.xlu0 0
        %658 = vperm.xlu0 %657, %v650
        %v659 = vpop.permute.xlu0 %658
        %v661 = vsub.f32 %v644, %v659
        %v662 = vmul.f32 %v661, 1.442695
        %v663 = vpow.pop %v662
        %664 = vadd.xlane.f32.xlu0 %v663
        %v665 = vpop.xlane.xlu0 %664
        %v666 = vadd.f32 %v655, %v665
        %vm667 = vcmask 7168
        %668 = vst.msk [vmem:[%s447] sm:$0xff] %vm667, %v650
        %669 = vst.msk [vmem:[%s451] sm:$0xff] %vm667, %v666
        %p670 = scmp.eq.s32.totalorder %s33, 1
        // Predicated region
        $region57: #{tpu_custom_call.1} parent=43 // pred_check
          %p671 = pneg %p670
        $region58: #{tpu_custom_call.1} parent=43 // pred_check_branch
          %673 = sbr.rel (%p671) target = $region60
        $region59: #{tpu_custom_call.1} parent=43 // pred_region
          %v674 = vld [vmem:[%s451] sm:$0xff]
          %v675 = vrcp.pop %v674
          %v676 = vmul.f32 1.0, %v675
          %677 = vst.msk [vmem:[%s451] sm:$0xff] %vm667, %v676
        $region60: #{tpu_custom_call.1} parent=43 // pred_fallthru
          _
        %s678 = sand.u32 %s194, 1
        %s679 = scalar_lea.sflag [#allocation4], %s678
        %s680 = sand.u32 %s194, 1
        %s681 = smul.addr %s680, 8
        %s682 = scalar_lea.vmem [#allocation7], %s681
        %p683 = scmp.lt.s32.totalorder %s32, 1
        %s684 = scalar_select %p683, %s32, 1
        %s685 = smul.addr %s684, 8
        %s686 = scalar_lea.vmem %s7, %s685
        %p687 = scmp.lt.s32.totalorder %s32, 1
        %s688 = scalar_select %p687, %s32, 1
        %s689 = smul.addr %s688, 8
        %s690 = scalar_lea.vmem %s8, %s689
        %p691 = scmp.lt.s32.totalorder %s32, 1
        %s692 = scalar_select %p691, %s32, 1
        %s693 = smul.addr %s692, 8
        %s694 = scalar_lea.vmem %s9, %s693
        // Predicated region
        $region61: #{tpu_custom_call.1} parent=43 // pred_check
          %p695 = pneg %p204
        $region62: #{tpu_custom_call.1} parent=43 // pred_check_branch
          %697 = sbr.rel (%p695) target = $region64
        $region63: #{tpu_custom_call.1} parent=43 // pred_region
          %s699 = ssub.s32 128, 128
          %700 = vsyncadd %s679, %s699
          %s701 = smul.addr %s32, 128
          %s702 = scalar_lea.hbm %s6, %s701
          %s704 = sshll.u32 %s682, 4
          %s705 = int_to_ptr.vmem [resolvable:$true] %s704
          %707 = dma.vmem_to_hbm [thread:$0]  %s705, 128, %s702, %s679
        $region64: #{tpu_custom_call.1} parent=43 // pred_fallthru
          _
        // Predicated region
        $region65: #{tpu_custom_call.1} parent=43 // pred_check
          %p708 = pneg %p230
        $region66: #{tpu_custom_call.1} parent=43 // pred_check_branch
          %710 = sbr.rel (%p708) target = $region68
        $region67: #{tpu_custom_call.1} parent=43 // pred_region
          _
        $region68: #{tpu_custom_call.1} parent=43 // pred_fallthru
          _
        // Predicated region
        $region69: #{tpu_custom_call.1} parent=43 // pred_check
          %p711 = pneg %p256
        $region70: #{tpu_custom_call.1} parent=43 // pred_check_branch
          %713 = sbr.rel (%p711) target = $region72
        $region71: #{tpu_custom_call.1} parent=43 // pred_region
          _
        $region72: #{tpu_custom_call.1} parent=43 // pred_fallthru
          _
        // Predicated region
        $region73: #{tpu_custom_call.1} parent=43 // pred_check
          %p714 = pneg %p282
        $region74: #{tpu_custom_call.1} parent=43 // pred_check_branch
          %716 = sbr.rel (%p714) target = $region76
        $region75: #{tpu_custom_call.1} parent=43 // pred_region
          _
        $region76: #{tpu_custom_call.1} parent=43 // pred_fallthru
          _
      $region44: #{tpu_custom_call.1} parent=5 // pred_fallthru
        _
      %p717 = scmp.le.s32.totalorder 2, %s23
      // Predicated region
      $region77: #{tpu_custom_call.1} parent=5 // pred_check
        %p718 = pneg %p717
      $region78: #{tpu_custom_call.1} parent=5 // pred_check_branch
        %720 = sbr.rel (%p718) target = $region80
      $region79: #{tpu_custom_call.1} parent=5 // pred_region
        %s721 = ssub.s32 %s23, 2
        // Predicated region
        $region81: #{tpu_custom_call.1} parent=79 // pred_check
          %p722 = pneg %p210
        $region82: #{tpu_custom_call.1} parent=79 // pred_check_branch
          %724 = sbr.rel (%p722) target = $region84
        $region83: #{tpu_custom_call.1} parent=79 // pred_region
          %s725 = sand.u32 %s195, 1
          %s726 = scalar_lea.sflag [#allocation4], %s725
          %s727 = sand.u32 %s195, 1
          %s728 = smul.addr %s727, 8
          %s729 = scalar_lea.vmem [#allocation7], %s728
          %730 = dma.done %s726, 128
        $region84: #{tpu_custom_call.1} parent=79 // pred_fallthru
          _
        // Predicated region
        $region85: #{tpu_custom_call.1} parent=79 // pred_check
          %p731 = pneg %p236
        $region86: #{tpu_custom_call.1} parent=79 // pred_check_branch
          %733 = sbr.rel (%p731) target = $region88
        $region87: #{tpu_custom_call.1} parent=79 // pred_region
          %p734 = scmp.lt.s32.totalorder %s34, 1
          %s735 = scalar_select %p734, %s34, 1
          %s736 = smul.addr %s735, 8
          %s737 = scalar_lea.vmem %s7, %s736
        $region88: #{tpu_custom_call.1} parent=79 // pred_fallthru
          _
        // Predicated region
        $region89: #{tpu_custom_call.1} parent=79 // pred_check
          %p738 = pneg %p262
        $region90: #{tpu_custom_call.1} parent=79 // pred_check_branch
          %740 = sbr.rel (%p738) target = $region92
        $region91: #{tpu_custom_call.1} parent=79 // pred_region
          %p741 = scmp.lt.s32.totalorder %s34, 1
          %s742 = scalar_select %p741, %s34, 1
          %s743 = smul.addr %s742, 8
          %s744 = scalar_lea.vmem %s8, %s743
        $region92: #{tpu_custom_call.1} parent=79 // pred_fallthru
          _
        // Predicated region
        $region93: #{tpu_custom_call.1} parent=79 // pred_check
          %p745 = pneg %p288
        $region94: #{tpu_custom_call.1} parent=79 // pred_check_branch
          %747 = sbr.rel (%p745) target = $region96
        $region95: #{tpu_custom_call.1} parent=79 // pred_region
          %p748 = scmp.lt.s32.totalorder %s34, 1
          %s749 = scalar_select %p748, %s34, 1
          %s750 = smul.addr %s749, 8
          %s751 = scalar_lea.vmem %s9, %s750
        $region96: #{tpu_custom_call.1} parent=79 // pred_fallthru
          _
      $region80: #{tpu_custom_call.1} parent=5 // pred_fallthru
        _
    $region6: #{tpu_custom_call.1} parent=1 // loop_footer
      %s27 = sadd.s32 1, %s23
    $region7: #{tpu_custom_call.1} parent=1 // loop_footer_branch
      %22 = sbr.rel target = $region3
    $region8: #{tpu_custom_call.1} parent=1 // loop_exit
      _
    %752 = vsyncpa [#allocation3], 1
    %s753 = scalar_lea.sflag [#allocation3], 1
    %754 = vsyncpa %s753, 1
    %755 = vsyncpa [#allocation6], 1
    %s756 = scalar_lea.sflag [#allocation6], 1
    %757 = vsyncpa %s756, 1
    %758 = vsyncpa [#allocation4], 1
    %s759 = scalar_lea.sflag [#allocation4], 1
    %760 = vsyncpa %s759, 1

</llo_original>
